<compile_context>
chip_gen: v5e
topology: v5e:2x2
jax: 0.10.0
libtpu: 0.0.40
codegen_flags: <defaults>
</compile_context>

<pallas_src>
import math

import jax
import jax.numpy as jnp
from jax import lax
from jax.experimental import pallas as pl
from jax.experimental.pallas import tpu as pltpu


def _round_up(x, m):
    return ((x + m - 1) // m) * m


def _intermediate_kernel(x_ref, w_ref, b_ref, o_ref):
    # x_ref: (tm, H)  token tile, native dtype (MXU fast path)
    # w_ref: (tn, H)  weight tile in PyTorch (out, in) layout
    # b_ref: (1, tn)  bias tile
    # o_ref: (tm, tn) output tile
    y = lax.dot_general(
        x_ref[...],
        w_ref[...],
        dimension_numbers=(((1,), (1,)), ((), ())),  # x @ W.T, f32 accumulate
        preferred_element_type=jnp.float32,
    )
    y = y + b_ref[...].astype(jnp.float32)
    # Exact erf-GELU (parity with torch.nn.functional.gelu used by BERT "gelu").
    # NOTE: tanh-approx GELU would land on the EUP (free slot on v6e/v7x) but
    # changes numerics, so exact erf is kept for module parity.
    y = 0.5 * y * (1.0 + lax.erf(y * (1.0 / math.sqrt(2.0))))
    o_ref[...] = y.astype(o_ref.dtype)


def _sublane(dtype):
    return {4: 8, 2: 16, 1: 32}.get(jnp.dtype(dtype).itemsize, 8)


def _pick_tm(M, sub, cap=256):
    """Token tile: sublane-granular; for ragged M minimize dead rows on the last tile."""
    if M <= cap:
        return _round_up(M, sub)
    best_tm, best_waste = None, None
    for cand in (cap, cap // 2, cap // 4):
        if cand < sub or cand % sub:
            continue
        waste = _round_up(M, cand) - M
        if best_waste is None or waste < best_waste:
            best_tm, best_waste = cand, waste
    return best_tm if best_tm is not None else _round_up(cap, sub)


def _vmem_capacity_bytes():
    try:
        return int(pltpu.get_tpu_info().vmem_capacity_bytes)
    except Exception:
        return 64 * 1024 * 1024  # conservative: v7x per-TensorCore VMEM


def sparse_bert_intermediate(hidden_states, weight, bias, *, tm=256):
    """hidden_states: (B, S, H); weight: (I, H) (PyTorch layout); bias: (I,)."""
    B, S, H = hidden_states.shape
    I = weight.shape[0]
    if I < 8:
        # SparseBertIntermediate.forward returns None when sparsified below 8.
        # TODO(synk): host-side guard mirroring the module; not jit-traceable.
        return None
    M = B * S

    x_isz = jnp.dtype(hidden_states.dtype).itemsize
    w_isz = jnp.dtype(weight.dtype).itemsize
    b_isz = jnp.dtype(bias.dtype).itemsize
    o_isz = x_isz

    # --- token tile + partial last block (no jnp.pad / slice round-trip) ------
    tm = _pick_tm(M, _sublane(hidden_states.dtype), cap=tm)
    grid_i = pl.cdiv(M, tm)

    # --- intermediate tile: lane-dense, as large as the VMEM budget allows ----
    N_pad = _round_up(I, 128)
    vmem_phys = _vmem_capacity_bytes()
    budget = (vmem_phys * 7) // 10  # headroom for compiler-internal scratch
    tn, need = 128, 0
    for cand in range(N_pad, 0, -128):
        if N_pad % cand:
            continue
        cand_need = (2 * tm * H * x_isz        # double-buffered x tile
                     + 2 * cand * H * w_isz    # double-buffered weight tile
                     + 2 * 8 * cand * b_isz    # bias tile (sublane-padded)
                     + 2 * tm * cand * o_isz)  # double-buffered output tile
        if cand_need <= budget or cand == 128:
            tn, need = cand, cand_need
            break
    grid_j = N_pad // tn

    # --- pad N only if intermediate_size is not lane-aligned (rare) -----------
    w_in = weight
    b_in = bias.reshape(1, I)
    if N_pad != I:
        w_in = jnp.pad(weight, ((0, N_pad - I), (0, 0)))
        b_in = jnp.pad(b_in, ((0, 0), (0, N_pad - I)))

    x2d = hidden_states.reshape(M, H)

    vmem_limit = int(min(max(need * 6 // 5, 16 * 1024 * 1024),
                         (vmem_phys * 7) // 8))

    # Megacore: shard the intermediate axis when it is split (keeps the weight
    # single-pass per core, e.g. on v7x); otherwise shard the token tiles.
    dims = ("parallel", "arbitrary") if grid_j > 1 else ("arbitrary", "parallel")

    out = pl.pallas_call(
        _intermediate_kernel,
        out_shape=jax.ShapeDtypeStruct((M, N_pad), hidden_states.dtype),
        grid_spec=pltpu.PrefetchScalarGridSpec(
            num_scalar_prefetch=0,
            grid=(grid_j, grid_i),                          # j outer -> weight resident
            in_specs=[
                pl.BlockSpec((tm, H), lambda j, i: (i, 0)),  # x: varies only with i
                pl.BlockSpec((tn, H), lambda j, i: (j, 0)),  # W: resident across i
                pl.BlockSpec((1, tn), lambda j, i: (0, j)),  # bias
            ],
            out_specs=pl.BlockSpec((tm, tn), lambda j, i: (i, j)),
        ),
        compiler_params=pltpu.CompilerParams(
            dimension_semantics=dims,
            vmem_limit_bytes=vmem_limit,
        ),
        cost_estimate=pl.CostEstimate(
            flops=2 * M * H * I,
            transcendentals=M * I,
            bytes_accessed=(grid_j * M * H * x_isz          # x streamed once per j
                            + N_pad * H * w_isz             # weight streamed once
                            + N_pad * b_isz
                            + M * N_pad * o_isz),
        ),
    )(x2d, w_in, b_in)

    if N_pad != I:
        out = out[:, :I]
    return out.reshape(B, S, I)


def reference(hidden_states, weight, bias):
    y = jnp.einsum("bsh,ih->bsi", hidden_states, weight) + bias
    return 0.5 * y * (1.0 + lax.erf(y / jnp.sqrt(2.0)))


if __name__ == "__main__":
    # Small config consistent with the module: hidden_size=32, intermediate_size=128,
    # batch=2, seq=8, hidden_act="gelu".
    B, S, H, I = 2, 8, 32, 128

    key = jax.random.PRNGKey(0)
    kx, kw, kb = jax.random.split(key, 3)
    hidden_states = jax.random.normal(kx, (B, S, H), dtype=jnp.float32)
    # Deterministic synthetic "parameter init" (not a checkpoint load).
    weight = jax.random.normal(kw, (I, H), dtype=jnp.float32) * 0.02
    bias = jax.random.normal(kb, (I,), dtype=jnp.float32) * 0.02

    out = sparse_bert_intermediate(hidden_states, weight, bias)
    out = jax.block_until_ready(out)

    ref = reference(hidden_states, weight, bias)
    assert out.shape == (B, S, I)
    assert jnp.allclose(out, ref, atol=1e-5, rtol=1e-5), "mismatch vs reference"

    print("KERNEL_OK")
</pallas_src>

<mosaic_0001>
module attributes {stable_mosaic.version = 11 : i64} {
  func.func @_intermediate_kernel(%arg0: i32, %arg1: i32, %arg2: memref<16x32xf32, #tpu.memory_space<vmem>>, %arg3: memref<128x32xf32, #tpu.memory_space<vmem>>, %arg4: memref<1x128xf32, #tpu.memory_space<vmem>>, %arg5: memref<16x128xf32, #tpu.memory_space<vmem>>) attributes {dimension_semantics = [#tpu.dimension_semantics<arbitrary>, #tpu.dimension_semantics<parallel>], iteration_bounds = array<i64: 1, 1>, scalar_prefetch = 0 : i64, scratch_operands = 0 : i64, tpu.core_type = #tpu.core_type<tc>, window_params = [{transform_indices = @transform_0, window_bounds = array<i64: 16, 32>}, {transform_indices = @transform_1, window_bounds = array<i64: 128, 32>}, {transform_indices = @transform_2, window_bounds = array<i64: 1, 128>}, {transform_indices = @transform_3, window_bounds = array<i64: 16, 128>}]} {
    %c0 = arith.constant 0 : index
    %c0_0 = arith.constant 0 : index
    %0 = vector.load %arg2[%c0, %c0_0] : memref<16x32xf32, #tpu.memory_space<vmem>>, vector<16x32xf32>
    %c0_1 = arith.constant 0 : index
    %c0_2 = arith.constant 0 : index
    %1 = vector.load %arg3[%c0_1, %c0_2] : memref<128x32xf32, #tpu.memory_space<vmem>>, vector<128x32xf32>
    %cst = arith.constant dense<0.000000e+00> : vector<16x128xf32>
    %2 = tpu.matmul %0, %1, %cst {dimension_numbers = #tpu.dot_dimension_numbers<[1], [1], [0], [0], [0, 0, 1, 0], [], []>} : vector<16x32xf32>, vector<128x32xf32>, vector<16x128xf32> -> vector<16x128xf32>
    %c0_3 = arith.constant 0 : index
    %c0_4 = arith.constant 0 : index
    %3 = vector.load %arg4[%c0_3, %c0_4] : memref<1x128xf32, #tpu.memory_space<vmem>>, vector<1x128xf32>
    %4 = vector.broadcast %3 : vector<1x128xf32> to vector<16x128xf32>
    %5 = arith.addf %2, %4 : vector<16x128xf32>
    %cst_5 = arith.constant 5.000000e-01 : f32
    %6 = vector.broadcast %cst_5 : f32 to vector<16x128xf32>
    %7 = arith.mulf %6, %5 : vector<16x128xf32>
    %cst_6 = arith.constant 0.707106769 : f32
    %8 = vector.broadcast %cst_6 : f32 to vector<16x128xf32>
    %9 = arith.mulf %5, %8 : vector<16x128xf32>
    %10 = math.erf %9 : vector<16x128xf32>
    %cst_7 = arith.constant 1.000000e+00 : f32
    %11 = vector.broadcast %cst_7 : f32 to vector<16x128xf32>
    %12 = arith.addf %11, %10 : vector<16x128xf32>
    %13 = arith.mulf %7, %12 : vector<16x128xf32>
    %c0_8 = arith.constant 0 : index
    %c0_9 = arith.constant 0 : index
    %14 = vector.load %arg5[%c0_8, %c0_9] : memref<16x128xf32, #tpu.memory_space<vmem>>, vector<16x128xf32>
    tpu.vector_store %arg5[%c0_8, %c0_9], %13 {strides = array<i32>} : memref<16x128xf32, #tpu.memory_space<vmem>>, vector<16x128xf32>,
    return
  }
  func.func @transform_0(%arg0: i32, %arg1: i32) -> (i32, i32) {
    %c0_i32 = arith.constant 0 : i32
    %c0_i32_0 = arith.constant 0 : i32
    return %arg1, %c0_i32 : i32, i32
  }
  func.func @transform_1(%arg0: i32, %arg1: i32) -> (i32, i32) {
    %c0_i32 = arith.constant 0 : i32
    %c0_i32_0 = arith.constant 0 : i32
    return %arg0, %c0_i32 : i32, i32
  }
  func.func @transform_2(%arg0: i32, %arg1: i32) -> (i32, i32) {
    %c0_i32 = arith.constant 0 : i32
    %c0_i32_0 = arith.constant 0 : i32
    return %c0_i32, %arg0 : i32, i32
  }
  func.func @transform_3(%arg0: i32, %arg1: i32) -> (i32, i32) {
    %c0_i32 = arith.constant 0 : i32
    return %arg1, %arg0 : i32, i32
  }
}

</mosaic_0001>

<llo_original>
// kernel: tpu_custom_call.1
$region0: #{tpu_custom_call.1}
  #allocation0 [shape = 'u32[]', space=smem, size = 0x4, offset = 0x4, fixed_abs, tag = 'smem constant byte address 0x4 - core index']
  #allocation1 [shape = 'u32[72,128]{1,0:T(1,128)}', space=vmem, size = 0x9000, scoped, tag = 'internal scratch']
  %s0 = inlined_call_operand.vmem [shape: f32[16,32], index: 0, kind: input, shape index: {}]
  %s1 = inlined_call_operand.vmem [shape: f32[128,32], index: 1, kind: input, shape index: {}]
  %s2 = inlined_call_operand.vmem [shape: f32[1,128], index: 2, kind: input, shape index: {}]
  %s3 = inlined_call_operand.hbm [shape: f32[16,128], index: 3, kind: output, shape index: {}]
  %s4 = sld [smem:[#allocation0]]
  $region22: #{tpu_custom_call.1} parent=0
    _
  %s6 = ssub.s32 1, %s4
  %s7 = scalar_select 0, %s6, %s4
  $region1: #{tpu_custom_call.1} parent=0
    #allocation2 [shape = 'u8[8192]{0}', space=vmem, size = 0x2000, scoped, tag = 'output window, operand 0, single buffered']
    #allocation3 [shape = 's32[1]{0}', space=sflag, size = 0x4, scoped, tag = 'scoped memory for tpu_custom_call.1']
    %8 = vsyncpa [#allocation3], 0
    // Predicated region
    $region2: #{tpu_custom_call.1} parent=1 // pred_check
      _
    $region3: #{tpu_custom_call.1} parent=1 // pred_check_branch
      %10 = sbr.rel (0) target = $region5
    $region4: #{tpu_custom_call.1} parent=1 // pred_region
      _
    $region5: #{tpu_custom_call.1} parent=1 // pred_fallthru
      _
    // Predicated region
    $region6: #{tpu_custom_call.1} parent=1 // pred_check
      _
    $region7: #{tpu_custom_call.1} parent=1 // pred_check_branch
      %12 = sbr.rel (0) target = $region9
    $region8: #{tpu_custom_call.1} parent=1 // pred_region
      _
    $region9: #{tpu_custom_call.1} parent=1 // pred_fallthru
      _
    // Predicated region
    $region10: #{tpu_custom_call.1} parent=1 // pred_check
      _
    $region11: #{tpu_custom_call.1} parent=1 // pred_check_branch
      %14 = sbr.rel (0) target = $region13
    $region12: #{tpu_custom_call.1} parent=1 // pred_region
      _
    $region13: #{tpu_custom_call.1} parent=1 // pred_fallthru
      _
    %v15 = vld [vmem:[%s0] sm:$0xff]
    %v16 = vld [vmem:[%s0 + $0x8] sm:$0xff]
    %v17 = vld [vmem:[%s1] sm:$0xff]
    %v18 = vld [vmem:[%s1 + $0x8] sm:$0xff]
    %v19 = vld [vmem:[%s1 + $0x10] sm:$0xff]
    %v20 = vld [vmem:[%s1 + $0x18] sm:$0xff]
    %v21 = vld [vmem:[%s1 + $0x20] sm:$0xff]
    %v22 = vld [vmem:[%s1 + $0x28] sm:$0xff]
    %v23 = vld [vmem:[%s1 + $0x30] sm:$0xff]
    %v24 = vld [vmem:[%s1 + $0x38] sm:$0xff]
    %v25 = vld [vmem:[%s1 + $0x40] sm:$0xff]
    %v26 = vld [vmem:[%s1 + $0x48] sm:$0xff]
    %v27 = vld [vmem:[%s1 + $0x50] sm:$0xff]
    %v28 = vld [vmem:[%s1 + $0x58] sm:$0xff]
    %v29 = vld [vmem:[%s1 + $0x60] sm:$0xff]
    %v30 = vld [vmem:[%s1 + $0x68] sm:$0xff]
    %v31 = vld [vmem:[%s1 + $0x70] sm:$0xff]
    %v32 = vld [vmem:[%s1 + $0x78] sm:$0xff]
    %v33 = vld [vmem:[%s2] sm:$0x1]
    %v35 = vperm.slane %v33, 0
    %vm37 = vcmask 261120
    %v39 = vsel %vm37, %v15, 0
    %v42 = vsel %vm37, %v16, 0
    %v45 = vsel %vm37, %v17, 0
    %v48 = vsel %vm37, %v18, 0
    %v51 = vsel %vm37, %v19, 0
    %v54 = vsel %vm37, %v20, 0
    %v57 = vsel %vm37, %v21, 0
    %v60 = vsel %vm37, %v22, 0
    %v63 = vsel %vm37, %v23, 0
    %v66 = vsel %vm37, %v24, 0
    %v69 = vsel %vm37, %v25, 0
    %v72 = vsel %vm37, %v26, 0
    %v75 = vsel %vm37, %v27, 0
    %v78 = vsel %vm37, %v28, 0
    %v81 = vsel %vm37, %v29, 0
    %v84 = vsel %vm37, %v30, 0
    %v87 = vsel %vm37, %v31, 0
    %v90 = vsel %vm37, %v32, 0
    %92 = vmatpush.xpose.msra.mxu0 %v90
    %93 = vmatpush.xpose.msra.mxu0 %v87
    %94 = vmatpush.xpose.msra.mxu0 %v84
    %95 = vmatpush.xpose.msra.mxu0 %v81
    %96 = vmatpush.xpose.msra.mxu0 %v78
    %97 = vmatpush.xpose.msra.mxu0 %v75
    %98 = vmatpush.xpose.msra.mxu0 %v72
    %99 = vmatpush.xpose.msra.mxu0 %v69
    %100 = vmatpush.xpose.msra.mxu0 %v66
    %101 = vmatpush.xpose.msra.mxu0 %v63
    %102 = vmatpush.xpose.msra.mxu0 %v60
    %103 = vmatpush.xpose.msra.mxu0 %v57
    %104 = vmatpush.xpose.msra.mxu0 %v54
    %105 = vmatpush.xpose.msra.mxu0 %v51
    %106 = vmatpush.xpose.msra.mxu0 %v48
    %107 = vmatpush.xpose.msra.mxu0 %v45
    %108 = vmatmul.f32.gmra.mxu0 %v39
    %v109 = vpop.f32.mrf.mxu0
    %v110 = vadd.f32 %v35, %v109
    %111 = vmatmul.f32.gmra.mxu0 %v42
    %v112 = vpop.f32.mrf.mxu0
    %v113 = vadd.f32 %v35, %v112
    %114 = vdwg.mxu0
    %v115 = vmul.f32 %v110, 0.5
    %v116 = vmul.f32 %v113, 0.5
    %v117 = vmul.f32 %v110, 0.70710677
    %v118 = vmul.f32 %v113, 0.70710677
    %v119 = vmul.f32 %v117, %v117
    %v120 = vmin.f32 16.0, %v119
    %v121 = vmul.f32 %v120, 2.1237322e-06
    %v122 = vadd.f32 %v121, 0.00028619796
    %v123 = vmul.f32 %v120, %v122
    %v124 = vadd.f32 %v123, 0.0036580483
    %v125 = vmul.f32 %v120, %v124
    %v126 = vadd.f32 %v125, 0.05243302
    %v127 = vmul.f32 %v120, %v126
    %v128 = vadd.f32 %v127, 0.18741608
    %v129 = vmul.f32 %v120, %v128
    %v130 = vadd.f32 %v129, 1.1283791
    %v131 = vmul.f32 %v117, %v130
    %v132 = vmul.f32 %v120, 3.8918573e-05
    %v133 = vadd.f32 %v132, 0.001143296
    %v134 = vmul.f32 %v120, %v133
    %v135 = vadd.f32 %v134, 0.014752088
    %v136 = vmul.f32 %v120, %v135
    %v137 = vadd.f32 %v136, 0.112945676
    %v138 = vmul.f32 %v120, %v137
    %v139 = vadd.f32 %v138, 0.4994258
    %v140 = vmul.f32 %v120, %v139
    %v141 = vadd.f32 %v140, 1.0
    %v142 = vrcp.pop %v141
    %v143 = vmul.f32 %v141, %v142
    %v144 = vsub.f32 1.0, %v143
    %v145 = vmul.f32 %v142, %v144
    %v146 = vadd.f32 %v142, %v145
    %vm147 = vweird.f32 %v141
    %vm148 = vweird.f32 %v142
    %vm149 = vmor %vm147, %vm148
    %v150 = vsel %vm149, %v142, %v146
    %v151 = vand.u32 2147483647, %v141
    %vm152 = vcmp.eq.f32.partialorder %v151, 8.507059e+37
    %v153 = vand.u32 %v141, 2147483648
    %v154 = vor.u32 1.1754944e-38, %v153
    %v155 = vsel %vm152, %v154, %v150
    %v156 = vmul.f32 %v131, %v155
    %v157 = vmin.f32 %v156, 1.0
    %v158 = vmax.f32 %v157, -1.0
    %v159 = vmul.f32 %v118, %v118
    %v160 = vmin.f32 16.0, %v159
    %v161 = vmul.f32 %v160, 2.1237322e-06
    %v162 = vadd.f32 %v161, 0.00028619796
    %v163 = vmul.f32 %v160, %v162
    %v164 = vadd.f32 %v163, 0.0036580483
    %v165 = vmul.f32 %v160, %v164
    %v166 = vadd.f32 %v165, 0.05243302
    %v167 = vmul.f32 %v160, %v166
    %v168 = vadd.f32 %v167, 0.18741608
    %v169 = vmul.f32 %v160, %v168
    %v170 = vadd.f32 %v169, 1.1283791
    %v171 = vmul.f32 %v118, %v170
    %v172 = vmul.f32 %v160, 3.8918573e-05
    %v173 = vadd.f32 %v172, 0.001143296
    %v174 = vmul.f32 %v160, %v173
    %v175 = vadd.f32 %v174, 0.014752088
    %v176 = vmul.f32 %v160, %v175
    %v177 = vadd.f32 %v176, 0.112945676
    %v178 = vmul.f32 %v160, %v177
    %v179 = vadd.f32 %v178, 0.4994258
    %v180 = vmul.f32 %v160, %v179
    %v181 = vadd.f32 %v180, 1.0
    %v182 = vrcp.pop %v181
    %v183 = vmul.f32 %v181, %v182
    %v184 = vsub.f32 1.0, %v183
    %v185 = vmul.f32 %v182, %v184
    %v186 = vadd.f32 %v182, %v185
    %vm187 = vweird.f32 %v181
    %vm188 = vweird.f32 %v182
    %vm189 = vmor %vm187, %vm188
    %v190 = vsel %vm189, %v182, %v186
    %v191 = vand.u32 2147483647, %v181
    %vm192 = vcmp.eq.f32.partialorder %v191, 8.507059e+37
    %v193 = vand.u32 %v181, 2147483648
    %v194 = vor.u32 1.1754944e-38, %v193
    %v195 = vsel %vm192, %v194, %v190
    %v196 = vmul.f32 %v171, %v195
    %v197 = vmin.f32 %v196, 1.0
    %v198 = vmax.f32 %v197, -1.0
    %v199 = vadd.f32 %v158, 1.0
    %v200 = vadd.f32 %v198, 1.0
    %v201 = vmul.f32 %v115, %v199
    %v202 = vmul.f32 %v116, %v200
    %203 = vst [vmem:[#allocation2] sm:$0xff] %v201
    %204 = vst [vmem:[#allocation2 + $0x8] sm:$0xff] %v202
    // Predicated region
    $region14: #{tpu_custom_call.1} parent=1 // pred_check
      _
    $region15: #{tpu_custom_call.1} parent=1 // pred_check_branch
      %206 = sbr.rel (0) target = $region17
    $region16: #{tpu_custom_call.1} parent=1 // pred_region
      %208 = vsyncadd [#allocation3], 0
      %s209 = sshll.u32 [#allocation2], 4
      %s210 = int_to_ptr.vmem [resolvable:$true] %s209
      %s211 = sshll.u32 %s3, 4
      %s212 = int_to_ptr.hbm [resolvable:$true] %s211
      %217 = dma.vmem_to_hbm [thread:$0]  %s210, 256, %s212, [#allocation3], 128, 128, 8
    $region17: #{tpu_custom_call.1} parent=1 // pred_fallthru
      _
    // Predicated region
    $region18: #{tpu_custom_call.1} parent=1 // pred_check
      _
    $region19: #{tpu_custom_call.1} parent=1 // pred_check_branch
      %219 = sbr.rel (0) target = $region21
    $region20: #{tpu_custom_call.1} parent=1 // pred_region
      %221 = dma.done [#allocation3], 256
    $region21: #{tpu_custom_call.1} parent=1 // pred_fallthru
      _
    %222 = vsyncpa [#allocation3], 1

</llo_original>
